<compile_context>
chip_gen: v5e
topology: v5e:2x2
jax: 0.10.0
libtpu: 0.0.40
codegen_flags: <defaults>
</compile_context>

<pallas_src>
import jax
import jax.numpy as jnp
from jax.experimental import pallas as pl
from jax.experimental.pallas import tpu as pltpu


def _pick_batch_block(batch, nodes, target_rows=512):
    """Largest batch block whose row count (B_blk*N) is MXU/sublane friendly."""
    if batch * nodes <= target_rows:
        return batch                          # whole problem in one grid step
    for d in range(batch, 0, -1):
        if batch % d == 0 and d * nodes <= target_rows and (d * nodes) % 8 == 0:
            return d
    return batch


def _rgcn_kernel(lc_ref, x_ref, adj_ref, basis_ref, wself_ref, out_ref, acc_ref):
    num_layer, num_basis = basis_ref.shape[0], basis_ref.shape[1]
    b_blk, rel_total, n, _ = adj_ref.shape
    num_rel = rel_total - 1                   # relations actually used: adj[:, 1:]
    cdt = basis_ref.dtype                     # MXU operand dtype (f32 or bf16)

    def lc(l, r, b):                          # flat scalar table in SMEM
        return lc_ref[(l * num_rel + r) * num_basis + b]

    # Load the adjacency block once; relation 0 is skipped exactly like the
    # `adjacency_matrix[:, 1:, :, :]` slice in the PyTorch module.
    adj_all = adj_ref[...].astype(jnp.float32)            # (B_blk, RT, N, N)
    adj_rel = [adj_all[:, r + 1, :, :] for r in range(num_rel)]

    x = x_ref[...].astype(jnp.float32)        # (B_blk*N, H), carried across layers
    for l in range(num_layer):                # static unroll over layers
        # Self loop: nn.Linear(H, H, bias=False) -> X @ W_self.T  (M-collapsed).
        acc_ref[...] = jnp.dot(x.astype(cdt), wself_ref[l],
                               preferred_element_type=jnp.float32)
        for b in range(num_basis):
            # Basis-first contraction (associativity): Y_b = X @ basis_b,
            # still M = B_blk*N collapsed through the MXU.
            y = jnp.dot(x.astype(cdt), basis_ref[l, b],
                        preferred_element_type=jnp.float32)
            # Fold the linear combination into the adjacency: A_b = sum_r lc*A_r
            # (exact algebra; scalars commute through the matmul).
            a = lc(l, 0, b) * adj_rel[0]
            for r in range(1, num_rel):
                a = a + lc(l, r, b) * adj_rel[r]
            # Block-diagonal (per-batch) aggregation A_b @ Y_b, accumulated in
            # the VMEM scratch; only one y / one a live at a time.
            for bi in range(b_blk):
                rows = pl.ds(bi * n, n)
                acc_ref[rows, :] += jnp.dot(
                    a[bi].astype(cdt), y[bi * n:(bi + 1) * n, :].astype(cdt),
                    preferred_element_type=jnp.float32)
        # ReLU on hidden layers, Sigmoid on the last layer (relational_GCN.forward).
        # TODO(synk): nn.Dropout(0.1) is identity in eval mode; training-mode
        # stochastic dropout is intentionally not applied here.
        if l < num_layer - 1:
            x = jnp.maximum(acc_ref[...], 0.0)
        else:
            x = jax.nn.sigmoid(acc_ref[...])

    # TODO(synk): with H=32 the out block's last dim is < 128 lanes (masked
    # stores); at production sizes a lane-dense (B, N*H) output slab arranged
    # wrapper-side would remove the partial-store epilogue.
    out_ref[...] = x.astype(out_ref.dtype)


def relational_gcn(node_embedding, adjacency_matrix, params, *,
                   compute_dtype=jnp.float32):
    B, N, H = node_embedding.shape
    basis = params["basis"].astype(compute_dtype)        # (L, NB, H, H)
    lincomb = params["lincomb"].astype(jnp.float32)      # (L, R, NB) scalars
    w_self = params["w_self"]                            # (L, H, H) Linear weight
    L, NB = int(basis.shape[0]), int(basis.shape[1])
    R = int(lincomb.shape[1])
    RT = int(adjacency_matrix.shape[1])
    assert RT == R + 1, (RT, R)

    # Pre-transpose so Linear(x) == x @ w_self_t[l] (tiny, done once by XLA).
    w_self_t = jnp.swapaxes(w_self, 1, 2).astype(compute_dtype)
    lc_flat = lincomb.reshape(-1)                         # flat 1-D SMEM table
    # Pass the FULL adjacency (no wrapper-side [:, 1:] copy). `.float()` of the
    # module; f32 default keeps this a no-op for f32 inputs.
    adj = adjacency_matrix.astype(
        jnp.float32 if compute_dtype == jnp.float32 else compute_dtype)
    x_flat = node_embedding.reshape(B * N, H).astype(jnp.float32)  # free reshape

    B_blk = _pick_batch_block(B, N)
    M_blk = B_blk * N

    grid_spec = pltpu.PrefetchScalarGridSpec(
        num_scalar_prefetch=0,
        grid=(B // B_blk,),
        in_specs=[
            pl.BlockSpec(memory_space=pltpu.MemorySpace.SMEM),        # lincomb (flat)
            pl.BlockSpec((M_blk, H), lambda i: (i, 0)),               # node rows
            pl.BlockSpec((B_blk, RT, N, N), lambda i: (i, 0, 0, 0)),  # full adjacency
            # Constant-index weight blocks: never re-fetched from a new offset;
            # default double-buffering costs 2*L*(NB+1)*H^2 elems of VMEM (small).
            pl.BlockSpec((L, NB, H, H), lambda i: (0, 0, 0, 0)),      # basis
            pl.BlockSpec((L, H, H), lambda i: (0, 0, 0)),             # W_self^T
        ],
        out_specs=pl.BlockSpec((M_blk, H), lambda i: (i, 0)),
        scratch_shapes=[pltpu.VMEM((M_blk, H), jnp.float32)],
    )

    # Explicit VMEM budget (blocks are double-buffered by the pipeline).
    esz = jnp.dtype(compute_dtype).itemsize
    est = (2 * M_blk * H * 4                      # x block (f32)
           + 2 * B_blk * RT * N * N * esz         # adjacency block
           + 2 * M_blk * H * 4                    # out block (f32)
           + 2 * L * (NB + 1) * H * H * esz       # basis + W_self^T
           + M_blk * H * 4)                       # accumulator scratch
    vmem_limit = int(min(max(4 * est, 16 * 1024 * 1024), 48 * 1024 * 1024))

    out_flat = pl.pallas_call(
        _rgcn_kernel,
        out_shape=jax.ShapeDtypeStruct((B * N, H), jnp.float32),
        grid_spec=grid_spec,
        compiler_params=pltpu.CompilerParams(
            # Independent batch blocks -> megacore sharding on v7x.
            # TODO(synk): for B_blk == B == 1 on v7x, split the node-row axis
            # across the two TensorCores instead of relying on the batch axis.
            dimension_semantics=("parallel",),
            vmem_limit_bytes=vmem_limit),
    )(lc_flat, x_flat, adj, basis, w_self_t)
    return out_flat.reshape(B, N, H)


def _reference(node_embedding, adjacency_matrix, params):
    """Pure-JAX reference of the PyTorch relational_GCN forward (eval mode)."""
    basis, lincomb, w_self = params["basis"], params["lincomb"], params["w_self"]
    L = basis.shape[0]
    adj = adjacency_matrix[:, 1:, :, :].astype(jnp.float32)
    x = node_embedding
    for l in range(L):
        w_rel = jnp.einsum("rb,bij->rij", lincomb[l], basis[l])      # (R, H, H)
        conn = jnp.einsum("brnm,bmh->brnh", adj, x)                  # A_r @ X
        conn = jnp.einsum("brnh,rhk->bnk", conn, w_rel)              # sum_r (.) @ W_r
        conn = conn + x @ w_self[l].T                                # + self loop
        x = jax.nn.relu(conn) if l < L - 1 else jax.nn.sigmoid(conn)
    return x


if __name__ == "__main__":
    key = jax.random.PRNGKey(0)
    B, N, H = 2, 4, 32                       # batch, nodes, hidden_size
    type_num, num_basis, num_layer = 3, 3, 2
    R = type_num - 1 + 2                     # relational-weight count after [:, 1:]
    ks = jax.random.split(key, 5)

    gain = 2.0 ** 0.5                        # nn.init.calculate_gain('relu')
    b_basis = gain * (6.0 / (H + num_basis * H)) ** 0.5
    b_lc = gain * (6.0 / (R + num_basis)) ** 0.5
    b_lin = 1.0 / H ** 0.5
    params = dict(
        basis=jax.random.uniform(ks[0], (num_layer, num_basis, H, H),
                                 jnp.float32, -b_basis, b_basis),
        lincomb=jax.random.uniform(ks[1], (num_layer, R, num_basis),
                                   jnp.float32, -b_lc, b_lc),
        w_self=jax.random.uniform(ks[2], (num_layer, H, H),
                                  jnp.float32, -b_lin, b_lin),
    )
    node_embedding = jax.random.normal(ks[3], (B, N, H), jnp.float32)
    adjacency = jax.nn.softmax(
        jax.random.normal(ks[4], (B, type_num + 2, N, N), jnp.float32), axis=-1)

    out = relational_gcn(node_embedding, adjacency, params)
    jax.block_until_ready(out)

    ref = _reference(node_embedding, adjacency, params)
    assert out.shape == (B, N, H)
    assert bool(jnp.allclose(out, ref, atol=5e-4, rtol=5e-4)), float(
        jnp.max(jnp.abs(out - ref)))
    print("KERNEL_OK")
</pallas_src>

<mosaic_0001>
module attributes {stable_mosaic.version = 11 : i64} {
  func.func @_rgcn_kernel(%arg0: i32, %arg1: memref<24xf32, #tpu.memory_space<smem>>, %arg2: memref<8x32xf32, #tpu.memory_space<vmem>>, %arg3: memref<2x5x4x4xf32, #tpu.memory_space<vmem>>, %arg4: memref<2x3x32x32xf32, #tpu.memory_space<vmem>>, %arg5: memref<2x32x32xf32, #tpu.memory_space<vmem>>, %arg6: memref<8x32xf32, #tpu.memory_space<vmem>>, %arg7: memref<8x32xf32, #tpu.memory_space<vmem>>) attributes {dimension_semantics = [#tpu.dimension_semantics<parallel>], iteration_bounds = array<i64: 1>, scalar_prefetch = 0 : i64, scratch_operands = 1 : i64, tpu.core_type = #tpu.core_type<tc>, window_params = [{transform_indices = @transform_0, window_bounds = array<i64: 24>}, {transform_indices = @transform_1, window_bounds = array<i64: 8, 32>}, {transform_indices = @transform_2, window_bounds = array<i64: 2, 5, 4, 4>}, {pipeline_mode = #tpu.pipeline_mode<synchronous>, transform_indices = @transform_3, window_bounds = array<i64: 2, 3, 32, 32>}, {pipeline_mode = #tpu.pipeline_mode<synchronous>, transform_indices = @transform_4, window_bounds = array<i64: 2, 32, 32>}, {transform_indices = @transform_5, window_bounds = array<i64: 8, 32>}]} {
    %c0 = arith.constant 0 : index
    %c0_0 = arith.constant 0 : index
    %c0_1 = arith.constant 0 : index
    %c0_2 = arith.constant 0 : index
    %0 = vector.load %arg3[%c0, %c0_0, %c0_1, %c0_2] : memref<2x5x4x4xf32, #tpu.memory_space<vmem>>, vector<2x5x4x4xf32>
    %1 = vector.extract_strided_slice %0 {offsets = [0, 1, 0, 0], sizes = [2, 1, 4, 4], strides = [1, 1, 1, 1]} : vector<2x5x4x4xf32> to vector<2x1x4x4xf32>
    %2 = vector.shape_cast %1 : vector<2x1x4x4xf32> to vector<2x4x4xf32>
    %3 = vector.extract_strided_slice %0 {offsets = [0, 2, 0, 0], sizes = [2, 1, 4, 4], strides = [1, 1, 1, 1]} : vector<2x5x4x4xf32> to vector<2x1x4x4xf32>
    %4 = vector.shape_cast %3 : vector<2x1x4x4xf32> to vector<2x4x4xf32>
    %5 = vector.extract_strided_slice %0 {offsets = [0, 3, 0, 0], sizes = [2, 1, 4, 4], strides = [1, 1, 1, 1]} : vector<2x5x4x4xf32> to vector<2x1x4x4xf32>
    %6 = vector.shape_cast %5 : vector<2x1x4x4xf32> to vector<2x4x4xf32>
    %7 = vector.extract_strided_slice %0 {offsets = [0, 4, 0, 0], sizes = [2, 1, 4, 4], strides = [1, 1, 1, 1]} : vector<2x5x4x4xf32> to vector<2x1x4x4xf32>
    %8 = vector.shape_cast %7 : vector<2x1x4x4xf32> to vector<2x4x4xf32>
    %c0_3 = arith.constant 0 : index
    %c0_4 = arith.constant 0 : index
    %9 = vector.load %arg2[%c0_3, %c0_4] : memref<8x32xf32, #tpu.memory_space<vmem>>, vector<8x32xf32>
    %c0_5 = arith.constant 0 : index
    %c0_6 = arith.constant 0 : index
    %c0_7 = arith.constant 0 : index
    %10 = vector.load %arg5[%c0_5, %c0_6, %c0_7] : memref<2x32x32xf32, #tpu.memory_space<vmem>>, vector<1x32x32xf32>
    %11 = vector.shape_cast %10 : vector<1x32x32xf32> to vector<32x32xf32>
    %cst = arith.constant dense<0.000000e+00> : vector<8x32xf32>
    %12 = tpu.matmul %9, %11, %cst {dimension_numbers = #tpu.dot_dimension_numbers<[1], [0], [0], [1], [0, 0, 1, 1], [], []>} : vector<8x32xf32>, vector<32x32xf32>, vector<8x32xf32> -> vector<8x32xf32>
    %c0_8 = arith.constant 0 : index
    %c0_9 = arith.constant 0 : index
    %13 = vector.load %arg7[%c0_8, %c0_9] : memref<8x32xf32, #tpu.memory_space<vmem>>, vector<8x32xf32>
    tpu.vector_store %arg7[%c0_8, %c0_9], %12 {strides = array<i32>} : memref<8x32xf32, #tpu.memory_space<vmem>>, vector<8x32xf32>,
    %c0_10 = arith.constant 0 : index
    %c0_11 = arith.constant 0 : index
    %c0_12 = arith.constant 0 : index
    %c0_13 = arith.constant 0 : index
    %14 = vector.load %arg4[%c0_10, %c0_11, %c0_12, %c0_13] : memref<2x3x32x32xf32, #tpu.memory_space<vmem>>, vector<1x1x32x32xf32>
    %15 = vector.shape_cast %14 : vector<1x1x32x32xf32> to vector<32x32xf32>
    %cst_14 = arith.constant dense<0.000000e+00> : vector<8x32xf32>
    %16 = tpu.matmul %9, %15, %cst_14 {dimension_numbers = #tpu.dot_dimension_numbers<[1], [0], [0], [1], [0, 0, 1, 1], [], []>} : vector<8x32xf32>, vector<32x32xf32>, vector<8x32xf32> -> vector<8x32xf32>
    %c0_15 = arith.constant 0 : index
    %17 = memref.load %arg1[%c0_15] : memref<24xf32, #tpu.memory_space<smem>>
    %18 = vector.broadcast %17 : f32 to vector<2x4x4xf32>
    %19 = arith.mulf %18, %2 : vector<2x4x4xf32>
    %c3 = arith.constant 3 : index
    %20 = memref.load %arg1[%c3] : memref<24xf32, #tpu.memory_space<smem>>
    %21 = vector.broadcast %20 : f32 to vector<2x4x4xf32>
    %22 = arith.mulf %21, %4 : vector<2x4x4xf32>
    %23 = arith.addf %19, %22 : vector<2x4x4xf32>
    %c6 = arith.constant 6 : index
    %24 = memref.load %arg1[%c6] : memref<24xf32, #tpu.memory_space<smem>>
    %25 = vector.broadcast %24 : f32 to vector<2x4x4xf32>
    %26 = arith.mulf %25, %6 : vector<2x4x4xf32>
    %27 = arith.addf %23, %26 : vector<2x4x4xf32>
    %c9 = arith.constant 9 : index
    %28 = memref.load %arg1[%c9] : memref<24xf32, #tpu.memory_space<smem>>
    %29 = vector.broadcast %28 : f32 to vector<2x4x4xf32>
    %30 = arith.mulf %29, %8 : vector<2x4x4xf32>
    %31 = arith.addf %27, %30 : vector<2x4x4xf32>
    %c0_16 = arith.constant 0 : index
    %c0_17 = arith.constant 0 : index
    %32 = vector.load %arg7[%c0_16, %c0_17] : memref<8x32xf32, #tpu.memory_space<vmem>>, vector<4x32xf32>
    %33 = vector.extract_strided_slice %31 {offsets = [0, 0, 0], sizes = [1, 4, 4], strides = [1, 1, 1]} : vector<2x4x4xf32> to vector<1x4x4xf32>
    %34 = vector.shape_cast %33 : vector<1x4x4xf32> to vector<4x4xf32>
    %35 = vector.extract_strided_slice %16 {offsets = [0, 0], sizes = [4, 32], strides = [1, 1]} : vector<8x32xf32> to vector<4x32xf32>
    %cst_18 = arith.constant dense<0.000000e+00> : vector<4x32xf32>
    %36 = tpu.matmul %34, %35, %cst_18 {dimension_numbers = #tpu.dot_dimension_numbers<[1], [0], [0], [1], [0, 0, 1, 1], [], []>} : vector<4x4xf32>, vector<4x32xf32>, vector<4x32xf32> -> vector<4x32xf32>
    %37 = arith.addf %32, %36 : vector<4x32xf32>
    %c0_19 = arith.constant 0 : index
    %c0_20 = arith.constant 0 : index
    %38 = vector.load %arg7[%c0_19, %c0_20] : memref<8x32xf32, #tpu.memory_space<vmem>>, vector<4x32xf32>
    tpu.vector_store %arg7[%c0_19, %c0_20], %37 {strides = array<i32>} : memref<8x32xf32, #tpu.memory_space<vmem>>, vector<4x32xf32>,
    %c4 = arith.constant 4 : index
    %c0_21 = arith.constant 0 : index
    %39 = vector.load %arg7[%c4, %c0_21] : memref<8x32xf32, #tpu.memory_space<vmem>>, vector<4x32xf32>
    %40 = vector.extract_strided_slice %31 {offsets = [1, 0, 0], sizes = [1, 4, 4], strides = [1, 1, 1]} : vector<2x4x4xf32> to vector<1x4x4xf32>
    %41 = vector.shape_cast %40 : vector<1x4x4xf32> to vector<4x4xf32>
    %42 = vector.extract_strided_slice %16 {offsets = [4, 0], sizes = [4, 32], strides = [1, 1]} : vector<8x32xf32> to vector<4x32xf32>
    %cst_22 = arith.constant dense<0.000000e+00> : vector<4x32xf32>
    %43 = tpu.matmul %41, %42, %cst_22 {dimension_numbers = #tpu.dot_dimension_numbers<[1], [0], [0], [1], [0, 0, 1, 1], [], []>} : vector<4x4xf32>, vector<4x32xf32>, vector<4x32xf32> -> vector<4x32xf32>
    %44 = arith.addf %39, %43 : vector<4x32xf32>
    %c4_23 = arith.constant 4 : index
    %c0_24 = arith.constant 0 : index
    %45 = vector.load %arg7[%c4_23, %c0_24] : memref<8x32xf32, #tpu.memory_space<vmem>>, vector<4x32xf32>
    tpu.vector_store %arg7[%c4_23, %c0_24], %44 {strides = array<i32>} : memref<8x32xf32, #tpu.memory_space<vmem>>, vector<4x32xf32>,
    %c0_25 = arith.constant 0 : index
    %c1 = arith.constant 1 : index
    %c0_26 = arith.constant 0 : index
    %c0_27 = arith.constant 0 : index
    %46 = vector.load %arg4[%c0_25, %c1, %c0_26, %c0_27] : memref<2x3x32x32xf32, #tpu.memory_space<vmem>>, vector<1x1x32x32xf32>
    %47 = vector.shape_cast %46 : vector<1x1x32x32xf32> to vector<32x32xf32>
    %cst_28 = arith.constant dense<0.000000e+00> : vector<8x32xf32>
    %48 = tpu.matmul %9, %47, %cst_28 {dimension_numbers = #tpu.dot_dimension_numbers<[1], [0], [0], [1], [0, 0, 1, 1], [], []>} : vector<8x32xf32>, vector<32x32xf32>, vector<8x32xf32> -> vector<8x32xf32>
    %c1_29 = arith.constant 1 : index
    %49 = memref.load %arg1[%c1_29] : memref<24xf32, #tpu.memory_space<smem>>
    %50 = vector.broadcast %49 : f32 to vector<2x4x4xf32>
    %51 = arith.mulf %50, %2 : vector<2x4x4xf32>
    %c4_30 = arith.constant 4 : index
    %52 = memref.load %arg1[%c4_30] : memref<24xf32, #tpu.memory_space<smem>>
    %53 = vector.broadcast %52 : f32 to vector<2x4x4xf32>
    %54 = arith.mulf %53, %4 : vector<2x4x4xf32>
    %55 = arith.addf %51, %54 : vector<2x4x4xf32>
    %c7 = arith.constant 7 : index
    %56 = memref.load %arg1[%c7] : memref<24xf32, #tpu.memory_space<smem>>
    %57 = vector.broadcast %56 : f32 to vector<2x4x4xf32>
    %58 = arith.mulf %57, %6 : vector<2x4x4xf32>
    %59 = arith.addf %55, %58 : vector<2x4x4xf32>
    %c10 = arith.constant 10 : index
    %60 = memref.load %arg1[%c10] : memref<24xf32, #tpu.memory_space<smem>>
    %61 = vector.broadcast %60 : f32 to vector<2x4x4xf32>
    %62 = arith.mulf %61, %8 : vector<2x4x4xf32>
    %63 = arith.addf %59, %62 : vector<2x4x4xf32>
    %c0_31 = arith.constant 0 : index
    %c0_32 = arith.constant 0 : index
    %64 = vector.load %arg7[%c0_31, %c0_32] : memref<8x32xf32, #tpu.memory_space<vmem>>, vector<4x32xf32>
    %65 = vector.extract_strided_slice %63 {offsets = [0, 0, 0], sizes = [1, 4, 4], strides = [1, 1, 1]} : vector<2x4x4xf32> to vector<1x4x4xf32>
    %66 = vector.shape_cast %65 : vector<1x4x4xf32> to vector<4x4xf32>
    %67 = vector.extract_strided_slice %48 {offsets = [0, 0], sizes = [4, 32], strides = [1, 1]} : vector<8x32xf32> to vector<4x32xf32>
    %cst_33 = arith.constant dense<0.000000e+00> : vector<4x32xf32>
    %68 = tpu.matmul %66, %67, %cst_33 {dimension_numbers = #tpu.dot_dimension_numbers<[1], [0], [0], [1], [0, 0, 1, 1], [], []>} : vector<4x4xf32>, vector<4x32xf32>, vector<4x32xf32> -> vector<4x32xf32>
    %69 = arith.addf %64, %68 : vector<4x32xf32>
    %c0_34 = arith.constant 0 : index
    %c0_35 = arith.constant 0 : index
    %70 = vector.load %arg7[%c0_34, %c0_35] : memref<8x32xf32, #tpu.memory_space<vmem>>, vector<4x32xf32>
    tpu.vector_store %arg7[%c0_34, %c0_35], %69 {strides = array<i32>} : memref<8x32xf32, #tpu.memory_space<vmem>>, vector<4x32xf32>,
    %c4_36 = arith.constant 4 : index
    %c0_37 = arith.constant 0 : index
    %71 = vector.load %arg7[%c4_36, %c0_37] : memref<8x32xf32, #tpu.memory_space<vmem>>, vector<4x32xf32>
    %72 = vector.extract_strided_slice %63 {offsets = [1, 0, 0], sizes = [1, 4, 4], strides = [1, 1, 1]} : vector<2x4x4xf32> to vector<1x4x4xf32>
    %73 = vector.shape_cast %72 : vector<1x4x4xf32> to vector<4x4xf32>
    %74 = vector.extract_strided_slice %48 {offsets = [4, 0], sizes = [4, 32], strides = [1, 1]} : vector<8x32xf32> to vector<4x32xf32>
    %cst_38 = arith.constant dense<0.000000e+00> : vector<4x32xf32>
    %75 = tpu.matmul %73, %74, %cst_38 {dimension_numbers = #tpu.dot_dimension_numbers<[1], [0], [0], [1], [0, 0, 1, 1], [], []>} : vector<4x4xf32>, vector<4x32xf32>, vector<4x32xf32> -> vector<4x32xf32>
    %76 = arith.addf %71, %75 : vector<4x32xf32>
    %c4_39 = arith.constant 4 : index
    %c0_40 = arith.constant 0 : index
    %77 = vector.load %arg7[%c4_39, %c0_40] : memref<8x32xf32, #tpu.memory_space<vmem>>, vector<4x32xf32>
    tpu.vector_store %arg7[%c4_39, %c0_40], %76 {strides = array<i32>} : memref<8x32xf32, #tpu.memory_space<vmem>>, vector<4x32xf32>,
    %c0_41 = arith.constant 0 : index
    %c2 = arith.constant 2 : index
    %c0_42 = arith.constant 0 : index
    %c0_43 = arith.constant 0 : index
    %78 = vector.load %arg4[%c0_41, %c2, %c0_42, %c0_43] : memref<2x3x32x32xf32, #tpu.memory_space<vmem>>, vector<1x1x32x32xf32>
    %79 = vector.shape_cast %78 : vector<1x1x32x32xf32> to vector<32x32xf32>
    %cst_44 = arith.constant dense<0.000000e+00> : vector<8x32xf32>
    %80 = tpu.matmul %9, %79, %cst_44 {dimension_numbers = #tpu.dot_dimension_numbers<[1], [0], [0], [1], [0, 0, 1, 1], [], []>} : vector<8x32xf32>, vector<32x32xf32>, vector<8x32xf32> -> vector<8x32xf32>
    %c2_45 = arith.constant 2 : index
    %81 = memref.load %arg1[%c2_45] : memref<24xf32, #tpu.memory_space<smem>>
    %82 = vector.broadcast %81 : f32 to vector<2x4x4xf32>
    %83 = arith.mulf %82, %2 : vector<2x4x4xf32>
    %c5 = arith.constant 5 : index
    %84 = memref.load %arg1[%c5] : memref<24xf32, #tpu.memory_space<smem>>
    %85 = vector.broadcast %84 : f32 to vector<2x4x4xf32>
    %86 = arith.mulf %85, %4 : vector<2x4x4xf32>
    %87 = arith.addf %83, %86 : vector<2x4x4xf32>
    %c8 = arith.constant 8 : index
    %88 = memref.load %arg1[%c8] : memref<24xf32, #tpu.memory_space<smem>>
    %89 = vector.broadcast %88 : f32 to vector<2x4x4xf32>
    %90 = arith.mulf %89, %6 : vector<2x4x4xf32>
    %91 = arith.addf %87, %90 : vector<2x4x4xf32>
    %c11 = arith.constant 11 : index
    %92 = memref.load %arg1[%c11] : memref<24xf32, #tpu.memory_space<smem>>
    %93 = vector.broadcast %92 : f32 to vector<2x4x4xf32>
    %94 = arith.mulf %93, %8 : vector<2x4x4xf32>
    %95 = arith.addf %91, %94 : vector<2x4x4xf32>
    %c0_46 = arith.constant 0 : index
    %c0_47 = arith.constant 0 : index
    %96 = vector.load %arg7[%c0_46, %c0_47] : memref<8x32xf32, #tpu.memory_space<vmem>>, vector<4x32xf32>
    %97 = vector.extract_strided_slice %95 {offsets = [0, 0, 0], sizes = [1, 4, 4], strides = [1, 1, 1]} : vector<2x4x4xf32> to vector<1x4x4xf32>
    %98 = vector.shape_cast %97 : vector<1x4x4xf32> to vector<4x4xf32>
    %99 = vector.extract_strided_slice %80 {offsets = [0, 0], sizes = [4, 32], strides = [1, 1]} : vector<8x32xf32> to vector<4x32xf32>
    %cst_48 = arith.constant dense<0.000000e+00> : vector<4x32xf32>
    %100 = tpu.matmul %98, %99, %cst_48 {dimension_numbers = #tpu.dot_dimension_numbers<[1], [0], [0], [1], [0, 0, 1, 1], [], []>} : vector<4x4xf32>, vector<4x32xf32>, vector<4x32xf32> -> vector<4x32xf32>
    %101 = arith.addf %96, %100 : vector<4x32xf32>
    %c0_49 = arith.constant 0 : index
    %c0_50 = arith.constant 0 : index
    %102 = vector.load %arg7[%c0_49, %c0_50] : memref<8x32xf32, #tpu.memory_space<vmem>>, vector<4x32xf32>
    tpu.vector_store %arg7[%c0_49, %c0_50], %101 {strides = array<i32>} : memref<8x32xf32, #tpu.memory_space<vmem>>, vector<4x32xf32>,
    %c4_51 = arith.constant 4 : index
    %c0_52 = arith.constant 0 : index
    %103 = vector.load %arg7[%c4_51, %c0_52] : memref<8x32xf32, #tpu.memory_space<vmem>>, vector<4x32xf32>
    %104 = vector.extract_strided_slice %95 {offsets = [1, 0, 0], sizes = [1, 4, 4], strides = [1, 1, 1]} : vector<2x4x4xf32> to vector<1x4x4xf32>
    %105 = vector.shape_cast %104 : vector<1x4x4xf32> to vector<4x4xf32>
    %106 = vector.extract_strided_slice %80 {offsets = [4, 0], sizes = [4, 32], strides = [1, 1]} : vector<8x32xf32> to vector<4x32xf32>
    %cst_53 = arith.constant dense<0.000000e+00> : vector<4x32xf32>
    %107 = tpu.matmul %105, %106, %cst_53 {dimension_numbers = #tpu.dot_dimension_numbers<[1], [0], [0], [1], [0, 0, 1, 1], [], []>} : vector<4x4xf32>, vector<4x32xf32>, vector<4x32xf32> -> vector<4x32xf32>
    %108 = arith.addf %103, %107 : vector<4x32xf32>
    %c4_54 = arith.constant 4 : index
    %c0_55 = arith.constant 0 : index
    %109 = vector.load %arg7[%c4_54, %c0_55] : memref<8x32xf32, #tpu.memory_space<vmem>>, vector<4x32xf32>
    tpu.vector_store %arg7[%c4_54, %c0_55], %108 {strides = array<i32>} : memref<8x32xf32, #tpu.memory_space<vmem>>, vector<4x32xf32>,
    %c0_56 = arith.constant 0 : index
    %c0_57 = arith.constant 0 : index
    %110 = vector.load %arg7[%c0_56, %c0_57] : memref<8x32xf32, #tpu.memory_space<vmem>>, vector<8x32xf32>
    %cst_58 = arith.constant 0.000000e+00 : f32
    %111 = vector.broadcast %cst_58 : f32 to vector<8x32xf32>
    %112 = arith.maximumf %110, %111 : vector<8x32xf32>
    %c1_59 = arith.constant 1 : index
    %c0_60 = arith.constant 0 : index
    %c0_61 = arith.constant 0 : index
    %113 = vector.load %arg5[%c1_59, %c0_60, %c0_61] : memref<2x32x32xf32, #tpu.memory_space<vmem>>, vector<1x32x32xf32>
    %114 = vector.shape_cast %113 : vector<1x32x32xf32> to vector<32x32xf32>
    %cst_62 = arith.constant dense<0.000000e+00> : vector<8x32xf32>
    %115 = tpu.matmul %112, %114, %cst_62 {dimension_numbers = #tpu.dot_dimension_numbers<[1], [0], [0], [1], [0, 0, 1, 1], [], []>} : vector<8x32xf32>, vector<32x32xf32>, vector<8x32xf32> -> vector<8x32xf32>
    %c0_63 = arith.constant 0 : index
    %c0_64 = arith.constant 0 : index
    %116 = vector.load %arg7[%c0_63, %c0_64] : memref<8x32xf32, #tpu.memory_space<vmem>>, vector<8x32xf32>
    tpu.vector_store %arg7[%c0_63, %c0_64], %115 {strides = array<i32>} : memref<8x32xf32, #tpu.memory_space<vmem>>, vector<8x32xf32>,
    %c1_65 = arith.constant 1 : index
    %c0_66 = arith.constant 0 : index
    %c0_67 = arith.constant 0 : index
    %c0_68 = arith.constant 0 : index
    %117 = vector.load %arg4[%c1_65, %c0_66, %c0_67, %c0_68] : memref<2x3x32x32xf32, #tpu.memory_space<vmem>>, vector<1x1x32x32xf32>
    %118 = vector.shape_cast %117 : vector<1x1x32x32xf32> to vector<32x32xf32>
    %cst_69 = arith.constant dense<0.000000e+00> : vector<8x32xf32>
    %119 = tpu.matmul %112, %118, %cst_69 {dimension_numbers = #tpu.dot_dimension_numbers<[1], [0], [0], [1], [0, 0, 1, 1], [], []>} : vector<8x32xf32>, vector<32x32xf32>, vector<8x32xf32> -> vector<8x32xf32>
    %c12 = arith.constant 12 : index
    %120 = memref.load %arg1[%c12] : memref<24xf32, #tpu.memory_space<smem>>
    %121 = vector.broadcast %120 : f32 to vector<2x4x4xf32>
    %122 = arith.mulf %121, %2 : vector<2x4x4xf32>
    %c15 = arith.constant 15 : index
    %123 = memref.load %arg1[%c15] : memref<24xf32, #tpu.memory_space<smem>>
    %124 = vector.broadcast %123 : f32 to vector<2x4x4xf32>
    %125 = arith.mulf %124, %4 : vector<2x4x4xf32>
    %126 = arith.addf %122, %125 : vector<2x4x4xf32>
    %c18 = arith.constant 18 : index
    %127 = memref.load %arg1[%c18] : memref<24xf32, #tpu.memory_space<smem>>
    %128 = vector.broadcast %127 : f32 to vector<2x4x4xf32>
    %129 = arith.mulf %128, %6 : vector<2x4x4xf32>
    %130 = arith.addf %126, %129 : vector<2x4x4xf32>
    %c21 = arith.constant 21 : index
    %131 = memref.load %arg1[%c21] : memref<24xf32, #tpu.memory_space<smem>>
    %132 = vector.broadcast %131 : f32 to vector<2x4x4xf32>
    %133 = arith.mulf %132, %8 : vector<2x4x4xf32>
    %134 = arith.addf %130, %133 : vector<2x4x4xf32>
    %c0_70 = arith.constant 0 : index
    %c0_71 = arith.constant 0 : index
    %135 = vector.load %arg7[%c0_70, %c0_71] : memref<8x32xf32, #tpu.memory_space<vmem>>, vector<4x32xf32>
    %136 = vector.extract_strided_slice %134 {offsets = [0, 0, 0], sizes = [1, 4, 4], strides = [1, 1, 1]} : vector<2x4x4xf32> to vector<1x4x4xf32>
    %137 = vector.shape_cast %136 : vector<1x4x4xf32> to vector<4x4xf32>
    %138 = vector.extract_strided_slice %119 {offsets = [0, 0], sizes = [4, 32], strides = [1, 1]} : vector<8x32xf32> to vector<4x32xf32>
    %cst_72 = arith.constant dense<0.000000e+00> : vector<4x32xf32>
    %139 = tpu.matmul %137, %138, %cst_72 {dimension_numbers = #tpu.dot_dimension_numbers<[1], [0], [0], [1], [0, 0, 1, 1], [], []>} : vector<4x4xf32>, vector<4x32xf32>, vector<4x32xf32> -> vector<4x32xf32>
    %140 = arith.addf %135, %139 : vector<4x32xf32>
    %c0_73 = arith.constant 0 : index
    %c0_74 = arith.constant 0 : index
    %141 = vector.load %arg7[%c0_73, %c0_74] : memref<8x32xf32, #tpu.memory_space<vmem>>, vector<4x32xf32>
    tpu.vector_store %arg7[%c0_73, %c0_74], %140 {strides = array<i32>} : memref<8x32xf32, #tpu.memory_space<vmem>>, vector<4x32xf32>,
    %c4_75 = arith.constant 4 : index
    %c0_76 = arith.constant 0 : index
    %142 = vector.load %arg7[%c4_75, %c0_76] : memref<8x32xf32, #tpu.memory_space<vmem>>, vector<4x32xf32>
    %143 = vector.extract_strided_slice %134 {offsets = [1, 0, 0], sizes = [1, 4, 4], strides = [1, 1, 1]} : vector<2x4x4xf32> to vector<1x4x4xf32>
    %144 = vector.shape_cast %143 : vector<1x4x4xf32> to vector<4x4xf32>
    %145 = vector.extract_strided_slice %119 {offsets = [4, 0], sizes = [4, 32], strides = [1, 1]} : vector<8x32xf32> to vector<4x32xf32>
    %cst_77 = arith.constant dense<0.000000e+00> : vector<4x32xf32>
    %146 = tpu.matmul %144, %145, %cst_77 {dimension_numbers = #tpu.dot_dimension_numbers<[1], [0], [0], [1], [0, 0, 1, 1], [], []>} : vector<4x4xf32>, vector<4x32xf32>, vector<4x32xf32> -> vector<4x32xf32>
    %147 = arith.addf %142, %146 : vector<4x32xf32>
    %c4_78 = arith.constant 4 : index
    %c0_79 = arith.constant 0 : index
    %148 = vector.load %arg7[%c4_78, %c0_79] : memref<8x32xf32, #tpu.memory_space<vmem>>, vector<4x32xf32>
    tpu.vector_store %arg7[%c4_78, %c0_79], %147 {strides = array<i32>} : memref<8x32xf32, #tpu.memory_space<vmem>>, vector<4x32xf32>,
    %c1_80 = arith.constant 1 : index
    %c1_81 = arith.constant 1 : index
    %c0_82 = arith.constant 0 : index
    %c0_83 = arith.constant 0 : index
    %149 = vector.load %arg4[%c1_80, %c1_81, %c0_82, %c0_83] : memref<2x3x32x32xf32, #tpu.memory_space<vmem>>, vector<1x1x32x32xf32>
    %150 = vector.shape_cast %149 : vector<1x1x32x32xf32> to vector<32x32xf32>
    %cst_84 = arith.constant dense<0.000000e+00> : vector<8x32xf32>
    %151 = tpu.matmul %112, %150, %cst_84 {dimension_numbers = #tpu.dot_dimension_numbers<[1], [0], [0], [1], [0, 0, 1, 1], [], []>} : vector<8x32xf32>, vector<32x32xf32>, vector<8x32xf32> -> vector<8x32xf32>
    %c13 = arith.constant 13 : index
    %152 = memref.load %arg1[%c13] : memref<24xf32, #tpu.memory_space<smem>>
    %153 = vector.broadcast %152 : f32 to vector<2x4x4xf32>
    %154 = arith.mulf %153, %2 : vector<2x4x4xf32>
    %c16 = arith.constant 16 : index
    %155 = memref.load %arg1[%c16] : memref<24xf32, #tpu.memory_space<smem>>
    %156 = vector.broadcast %155 : f32 to vector<2x4x4xf32>
    %157 = arith.mulf %156, %4 : vector<2x4x4xf32>
    %158 = arith.addf %154, %157 : vector<2x4x4xf32>
    %c19 = arith.constant 19 : index
    %159 = memref.load %arg1[%c19] : memref<24xf32, #tpu.memory_space<smem>>
    %160 = vector.broadcast %159 : f32 to vector<2x4x4xf32>
    %161 = arith.mulf %160, %6 : vector<2x4x4xf32>
    %162 = arith.addf %158, %161 : vector<2x4x4xf32>
    %c22 = arith.constant 22 : index
    %163 = memref.load %arg1[%c22] : memref<24xf32, #tpu.memory_space<smem>>
    %164 = vector.broadcast %163 : f32 to vector<2x4x4xf32>
    %165 = arith.mulf %164, %8 : vector<2x4x4xf32>
    %166 = arith.addf %162, %165 : vector<2x4x4xf32>
    %c0_85 = arith.constant 0 : index
    %c0_86 = arith.constant 0 : index
    %167 = vector.load %arg7[%c0_85, %c0_86] : memref<8x32xf32, #tpu.memory_space<vmem>>, vector<4x32xf32>
    %168 = vector.extract_strided_slice %166 {offsets = [0, 0, 0], sizes = [1, 4, 4], strides = [1, 1, 1]} : vector<2x4x4xf32> to vector<1x4x4xf32>
    %169 = vector.shape_cast %168 : vector<1x4x4xf32> to vector<4x4xf32>
    %170 = vector.extract_strided_slice %151 {offsets = [0, 0], sizes = [4, 32], strides = [1, 1]} : vector<8x32xf32> to vector<4x32xf32>
    %cst_87 = arith.constant dense<0.000000e+00> : vector<4x32xf32>
    %171 = tpu.matmul %169, %170, %cst_87 {dimension_numbers = #tpu.dot_dimension_numbers<[1], [0], [0], [1], [0, 0, 1, 1], [], []>} : vector<4x4xf32>, vector<4x32xf32>, vector<4x32xf32> -> vector<4x32xf32>
    %172 = arith.addf %167, %171 : vector<4x32xf32>
    %c0_88 = arith.constant 0 : index
    %c0_89 = arith.constant 0 : index
    %173 = vector.load %arg7[%c0_88, %c0_89] : memref<8x32xf32, #tpu.memory_space<vmem>>, vector<4x32xf32>
    tpu.vector_store %arg7[%c0_88, %c0_89], %172 {strides = array<i32>} : memref<8x32xf32, #tpu.memory_space<vmem>>, vector<4x32xf32>,
    %c4_90 = arith.constant 4 : index
    %c0_91 = arith.constant 0 : index
    %174 = vector.load %arg7[%c4_90, %c0_91] : memref<8x32xf32, #tpu.memory_space<vmem>>, vector<4x32xf32>
    %175 = vector.extract_strided_slice %166 {offsets = [1, 0, 0], sizes = [1, 4, 4], strides = [1, 1, 1]} : vector<2x4x4xf32> to vector<1x4x4xf32>
    %176 = vector.shape_cast %175 : vector<1x4x4xf32> to vector<4x4xf32>
    %177 = vector.extract_strided_slice %151 {offsets = [4, 0], sizes = [4, 32], strides = [1, 1]} : vector<8x32xf32> to vector<4x32xf32>
    %cst_92 = arith.constant dense<0.000000e+00> : vector<4x32xf32>
    %178 = tpu.matmul %176, %177, %cst_92 {dimension_numbers = #tpu.dot_dimension_numbers<[1], [0], [0], [1], [0, 0, 1, 1], [], []>} : vector<4x4xf32>, vector<4x32xf32>, vector<4x32xf32> -> vector<4x32xf32>
    %179 = arith.addf %174, %178 : vector<4x32xf32>
    %c4_93 = arith.constant 4 : index
    %c0_94 = arith.constant 0 : index
    %180 = vector.load %arg7[%c4_93, %c0_94] : memref<8x32xf32, #tpu.memory_space<vmem>>, vector<4x32xf32>
    tpu.vector_store %arg7[%c4_93, %c0_94], %179 {strides = array<i32>} : memref<8x32xf32, #tpu.memory_space<vmem>>, vector<4x32xf32>,
    %c1_95 = arith.constant 1 : index
    %c2_96 = arith.constant 2 : index
    %c0_97 = arith.constant 0 : index
    %c0_98 = arith.constant 0 : index
    %181 = vector.load %arg4[%c1_95, %c2_96, %c0_97, %c0_98] : memref<2x3x32x32xf32, #tpu.memory_space<vmem>>, vector<1x1x32x32xf32>
    %182 = vector.shape_cast %181 : vector<1x1x32x32xf32> to vector<32x32xf32>
    %cst_99 = arith.constant dense<0.000000e+00> : vector<8x32xf32>
    %183 = tpu.matmul %112, %182, %cst_99 {dimension_numbers = #tpu.dot_dimension_numbers<[1], [0], [0], [1], [0, 0, 1, 1], [], []>} : vector<8x32xf32>, vector<32x32xf32>, vector<8x32xf32> -> vector<8x32xf32>
    %c14 = arith.constant 14 : index
    %184 = memref.load %arg1[%c14] : memref<24xf32, #tpu.memory_space<smem>>
    %185 = vector.broadcast %184 : f32 to vector<2x4x4xf32>
    %186 = arith.mulf %185, %2 : vector<2x4x4xf32>
    %c17 = arith.constant 17 : index
    %187 = memref.load %arg1[%c17] : memref<24xf32, #tpu.memory_space<smem>>
    %188 = vector.broadcast %187 : f32 to vector<2x4x4xf32>
    %189 = arith.mulf %188, %4 : vector<2x4x4xf32>
    %190 = arith.addf %186, %189 : vector<2x4x4xf32>
    %c20 = arith.constant 20 : index
    %191 = memref.load %arg1[%c20] : memref<24xf32, #tpu.memory_space<smem>>
    %192 = vector.broadcast %191 : f32 to vector<2x4x4xf32>
    %193 = arith.mulf %192, %6 : vector<2x4x4xf32>
    %194 = arith.addf %190, %193 : vector<2x4x4xf32>
    %c23 = arith.constant 23 : index
    %195 = memref.load %arg1[%c23] : memref<24xf32, #tpu.memory_space<smem>>
    %196 = vector.broadcast %195 : f32 to vector<2x4x4xf32>
    %197 = arith.mulf %196, %8 : vector<2x4x4xf32>
    %198 = arith.addf %194, %197 : vector<2x4x4xf32>
    %c0_100 = arith.constant 0 : index
    %c0_101 = arith.constant 0 : index
    %199 = vector.load %arg7[%c0_100, %c0_101] : memref<8x32xf32, #tpu.memory_space<vmem>>, vector<4x32xf32>
    %200 = vector.extract_strided_slice %198 {offsets = [0, 0, 0], sizes = [1, 4, 4], strides = [1, 1, 1]} : vector<2x4x4xf32> to vector<1x4x4xf32>
    %201 = vector.shape_cast %200 : vector<1x4x4xf32> to vector<4x4xf32>
    %202 = vector.extract_strided_slice %183 {offsets = [0, 0], sizes = [4, 32], strides = [1, 1]} : vector<8x32xf32> to vector<4x32xf32>
    %cst_102 = arith.constant dense<0.000000e+00> : vector<4x32xf32>
    %203 = tpu.matmul %201, %202, %cst_102 {dimension_numbers = #tpu.dot_dimension_numbers<[1], [0], [0], [1], [0, 0, 1, 1], [], []>} : vector<4x4xf32>, vector<4x32xf32>, vector<4x32xf32> -> vector<4x32xf32>
    %204 = arith.addf %199, %203 : vector<4x32xf32>
    %c0_103 = arith.constant 0 : index
    %c0_104 = arith.constant 0 : index
    %205 = vector.load %arg7[%c0_103, %c0_104] : memref<8x32xf32, #tpu.memory_space<vmem>>, vector<4x32xf32>
    tpu.vector_store %arg7[%c0_103, %c0_104], %204 {strides = array<i32>} : memref<8x32xf32, #tpu.memory_space<vmem>>, vector<4x32xf32>,
    %c4_105 = arith.constant 4 : index
    %c0_106 = arith.constant 0 : index
    %206 = vector.load %arg7[%c4_105, %c0_106] : memref<8x32xf32, #tpu.memory_space<vmem>>, vector<4x32xf32>
    %207 = vector.extract_strided_slice %198 {offsets = [1, 0, 0], sizes = [1, 4, 4], strides = [1, 1, 1]} : vector<2x4x4xf32> to vector<1x4x4xf32>
    %208 = vector.shape_cast %207 : vector<1x4x4xf32> to vector<4x4xf32>
    %209 = vector.extract_strided_slice %183 {offsets = [4, 0], sizes = [4, 32], strides = [1, 1]} : vector<8x32xf32> to vector<4x32xf32>
    %cst_107 = arith.constant dense<0.000000e+00> : vector<4x32xf32>
    %210 = tpu.matmul %208, %209, %cst_107 {dimension_numbers = #tpu.dot_dimension_numbers<[1], [0], [0], [1], [0, 0, 1, 1], [], []>} : vector<4x4xf32>, vector<4x32xf32>, vector<4x32xf32> -> vector<4x32xf32>
    %211 = arith.addf %206, %210 : vector<4x32xf32>
    %c4_108 = arith.constant 4 : index
    %c0_109 = arith.constant 0 : index
    %212 = vector.load %arg7[%c4_108, %c0_109] : memref<8x32xf32, #tpu.memory_space<vmem>>, vector<4x32xf32>
    tpu.vector_store %arg7[%c4_108, %c0_109], %211 {strides = array<i32>} : memref<8x32xf32, #tpu.memory_space<vmem>>, vector<4x32xf32>,
    %c0_110 = arith.constant 0 : index
    %c0_111 = arith.constant 0 : index
    %213 = vector.load %arg7[%c0_110, %c0_111] : memref<8x32xf32, #tpu.memory_space<vmem>>, vector<8x32xf32>
    %214 = arith.negf %213 : vector<8x32xf32>
    %215 = math.exp %214 : vector<8x32xf32>
    %cst_112 = arith.constant 1.000000e+00 : f32
    %216 = vector.broadcast %cst_112 : f32 to vector<8x32xf32>
    %217 = arith.addf %216, %215 : vector<8x32xf32>
    %218 = arith.divf %216, %217 : vector<8x32xf32>
    %c0_113 = arith.constant 0 : index
    %c0_114 = arith.constant 0 : index
    %219 = vector.load %arg6[%c0_113, %c0_114] : memref<8x32xf32, #tpu.memory_space<vmem>>, vector<8x32xf32>
    tpu.vector_store %arg6[%c0_113, %c0_114], %218 {strides = array<i32>} : memref<8x32xf32, #tpu.memory_space<vmem>>, vector<8x32xf32>,
    return
  }
  func.func @transform_0(%arg0: i32) -> i32 {
    %c0_i32 = arith.constant 0 : i32
    %c0_i32_0 = arith.constant 0 : i32
    return %c0_i32 : i32
  }
  func.func @transform_1(%arg0: i32) -> (i32, i32) {
    %c0_i32 = arith.constant 0 : i32
    %c0_i32_0 = arith.constant 0 : i32
    return %arg0, %c0_i32 : i32, i32
  }
  func.func @transform_2(%arg0: i32) -> (i32, i32, i32, i32) {
    %c0_i32 = arith.constant 0 : i32
    %c0_i32_0 = arith.constant 0 : i32
    %c0_i32_1 = arith.constant 0 : i32
    %c0_i32_2 = arith.constant 0 : i32
    return %arg0, %c0_i32, %c0_i32_0, %c0_i32_1 : i32, i32, i32, i32
  }
  func.func @transform_3(%arg0: i32) -> (i32, i32, i32, i32) {
    %c0_i32 = arith.constant 0 : i32
    %c0_i32_0 = arith.constant 0 : i32
    %c0_i32_1 = arith.constant 0 : i32
    %c0_i32_2 = arith.constant 0 : i32
    %c0_i32_3 = arith.constant 0 : i32
    return %c0_i32, %c0_i32_0, %c0_i32_1, %c0_i32_2 : i32, i32, i32, i32
  }
  func.func @transform_4(%arg0: i32) -> (i32, i32, i32) {
    %c0_i32 = arith.constant 0 : i32
    %c0_i32_0 = arith.constant 0 : i32
    %c0_i32_1 = arith.constant 0 : i32
    %c0_i32_2 = arith.constant 0 : i32
    return %c0_i32, %c0_i32_0, %c0_i32_1 : i32, i32, i32
  }
  func.func @transform_5(%arg0: i32) -> (i32, i32) {
    %c0_i32 = arith.constant 0 : i32
    %c0_i32_0 = arith.constant 0 : i32
    return %arg0, %c0_i32 : i32, i32
  }
}

</mosaic_0001>

<llo_original>
// kernel: tpu_custom_call.1
$region0: #{tpu_custom_call.1}
  #allocation0 [shape = 'u32[]', space=smem, size = 0x4, offset = 0x4, fixed_abs, tag = 'smem constant byte address 0x4 - core index']
  #allocation1 [shape = 'u32[72,128]{1,0:T(1,128)}', space=vmem, size = 0x9000, scoped, tag = 'internal scratch']
  #allocation2 [shape = 'f32[8,32]{1,0:T(8,128)}', space=vmem, size = 0x1000, scoped, tag = 'scratch operand']
  %s0 = inlined_call_operand.vmem [shape: f32[24], index: 0, kind: input, shape index: {}]
  %s1 = inlined_call_operand.vmem [shape: f32[8,32], index: 1, kind: input, shape index: {}]
  %s2 = inlined_call_operand.vmem [shape: f32[2,5,4,4], index: 2, kind: input, shape index: {}]
  %s3 = inlined_call_operand.hbm [shape: f32[2,3,32,32], index: 3, kind: input, shape index: {}]
  %s4 = inlined_call_operand.vmem [shape: f32[2,32,32], index: 4, kind: input, shape index: {}]
  %s5 = inlined_call_operand.hbm [shape: f32[8,32], index: 5, kind: output, shape index: {}]
  %s6 = sld [smem:[#allocation0]]
  $region38: #{tpu_custom_call.1} parent=0
    _
  %s8 = ssub.s32 1, %s6
  %s9 = scalar_select 0, %s8, %s6
  $region1: #{tpu_custom_call.1} parent=0
    #allocation3 [shape = 'u8[512]{0}', space=smem, size = 0x200, scoped, tag = 'input window, operand 0, single buffered']
    #allocation4 [shape = 's32[1]{0}', space=sflag, size = 0x4, scoped, tag = 'scoped memory for tpu_custom_call.1']
    #allocation5 [shape = 's32[1]{0}', space=sflag, size = 0x4, scoped, tag = 'scoped memory for tpu_custom_call.1']
    #allocation6 [shape = 's32[1]{0}', space=sflag, size = 0x4, scoped, tag = 'scoped memory for tpu_custom_call.1']
    #allocation7 [shape = 'u8[98304]{0}', space=vmem, size = 0x18000, scoped, tag = 'input window, operand 3, single buffered']
    #allocation8 [shape = 'u8[4096]{0}', space=vmem, size = 0x1000, scoped, tag = 'output window, operand 0, single buffered']
    %10 = vsyncpa [#allocation6], 0
    %11 = vsyncpa [#allocation4], 0
    %12 = vsyncpa [#allocation5], 0
    // Predicated region
    $region2: #{tpu_custom_call.1} parent=1 // pred_check
      _
    $region3: #{tpu_custom_call.1} parent=1 // pred_check_branch
      %14 = sbr.rel (0) target = $region5
    $region4: #{tpu_custom_call.1} parent=1 // pred_region
      %16 = vsyncadd [#allocation6], 0
      %s18 = sshll.u32 %s0, 4
      %s19 = int_to_ptr.vmem [resolvable:$true] %s18
      %21 = dma.vmem_to_smem %s19, 16, [#allocation3], [#allocation6]
    $region5: #{tpu_custom_call.1} parent=1 // pred_fallthru
      _
    // Predicated region
    $region6: #{tpu_custom_call.1} parent=1 // pred_check
      _
    $region7: #{tpu_custom_call.1} parent=1 // pred_check_branch
      %23 = sbr.rel (0) target = $region9
    $region8: #{tpu_custom_call.1} parent=1 // pred_region
      _
    $region9: #{tpu_custom_call.1} parent=1 // pred_fallthru
      _
    // Predicated region
    $region10: #{tpu_custom_call.1} parent=1 // pred_check
      _
    $region11: #{tpu_custom_call.1} parent=1 // pred_check_branch
      %25 = sbr.rel (0) target = $region13
    $region12: #{tpu_custom_call.1} parent=1 // pred_region
      _
    $region13: #{tpu_custom_call.1} parent=1 // pred_fallthru
      _
    // Predicated region
    $region14: #{tpu_custom_call.1} parent=1 // pred_check
      _
    $region15: #{tpu_custom_call.1} parent=1 // pred_check_branch
      %27 = sbr.rel (0) target = $region17
    $region16: #{tpu_custom_call.1} parent=1 // pred_region
      %29 = vsyncadd [#allocation4], 0
      %s30 = sshll.u32 %s3, 4
      %s31 = int_to_ptr.hbm [resolvable:$true] %s30
      %s32 = sshll.u32 [#allocation7], 4
      %s33 = int_to_ptr.vmem [resolvable:$true] %s32
      %38 = dma.hbm_to_vmem [thread:$0]  %s31, 3072, %s33, [#allocation4], 128, 128, 8
    $region17: #{tpu_custom_call.1} parent=1 // pred_fallthru
      _
    // Predicated region
    $region18: #{tpu_custom_call.1} parent=1 // pred_check
      _
    $region19: #{tpu_custom_call.1} parent=1 // pred_check_branch
      %40 = sbr.rel (0) target = $region21
    $region20: #{tpu_custom_call.1} parent=1 // pred_region
      _
    $region21: #{tpu_custom_call.1} parent=1 // pred_fallthru
      _
    // Predicated region
    $region22: #{tpu_custom_call.1} parent=1 // pred_check
      _
    $region23: #{tpu_custom_call.1} parent=1 // pred_check_branch
      %42 = sbr.rel (0) target = $region25
    $region24: #{tpu_custom_call.1} parent=1 // pred_region
      %44 = dma.done [#allocation6], 16
    $region25: #{tpu_custom_call.1} parent=1 // pred_fallthru
      _
    // Predicated region
    $region26: #{tpu_custom_call.1} parent=1 // pred_check
      _
    $region27: #{tpu_custom_call.1} parent=1 // pred_check_branch
      %46 = sbr.rel (0) target = $region29
    $region28: #{tpu_custom_call.1} parent=1 // pred_region
      %48 = dma.done [#allocation4], 3072
    $region29: #{tpu_custom_call.1} parent=1 // pred_fallthru
      _
    %49 = sfence
    %v50 = vld [vmem:[%s2 + $0x4] sm:$0xf]
    %v51 = vld [vmem:[%s2 + $0x8] sm:$0xf]
    %v52 = vld [vmem:[%s2 + $0xc] sm:$0xf]
    %v53 = vld [vmem:[%s2 + $0x10] sm:$0xf]
    %v54 = vld [vmem:[%s2 + $0x18] sm:$0xf]
    %v55 = vld [vmem:[%s2 + $0x1c] sm:$0xf]
    %v56 = vld [vmem:[%s2 + $0x20] sm:$0xf]
    %v57 = vld [vmem:[%s2 + $0x24] sm:$0xf]
    %v58 = vld [vmem:[%s1] sm:$0xff]
    %v59 = vld [vmem:[%s4] sm:$0xff]
    %v60 = vld [vmem:[%s4 + $0x8] sm:$0xff]
    %v61 = vld [vmem:[%s4 + $0x10] sm:$0xff]
    %v62 = vld [vmem:[%s4 + $0x18] sm:$0xff]
    %vm63 = vcmask 261120
    %v65 = vsel %vm63, %v58, 0
    %67 = vmatpush.msra.mxu0 0.0
    %68 = vmatpush.msra.mxu0 0.0
    %69 = vmatpush.msra.mxu0 0.0
    %70 = vmatpush.msra.mxu0 0.0
    %71 = vmatpush.msra.mxu0 0.0
    %72 = vmatpush.msra.mxu0 0.0
    %73 = vmatpush.msra.mxu0 0.0
    %74 = vmatpush.msra.mxu0 0.0
    %75 = vmatpush.msra.mxu0 0.0
    %76 = vmatpush.msra.mxu0 0.0
    %77 = vmatpush.msra.mxu0 0.0
    %78 = vmatpush.msra.mxu0 0.0
    %79 = vmatpush.msra.mxu0 %v62
    %80 = vmatpush.msra.mxu0 %v61
    %81 = vmatpush.msra.mxu0 %v60
    %82 = vmatpush.msra.mxu0 %v59
    %83 = vmatmul.f32.gmra.mxu0 %v65
    %v84 = vpop.f32.mrf.mxu0
    %v85 = vadd.f32 0.0, %v84
    %86 = vdwg.mxu0
    %87 = vst.msk [vmem:[#allocation2] sm:$0xff] %vm63, %v85
    %v88 = vld [vmem:[#allocation7] sm:$0xff]
    %v89 = vld [vmem:[#allocation7 + $0x8] sm:$0xff]
    %v90 = vld [vmem:[#allocation7 + $0x10] sm:$0xff]
    %v91 = vld [vmem:[#allocation7 + $0x18] sm:$0xff]
    %92 = vmatpush.msra.mxu0 0.0
    %93 = vmatpush.msra.mxu0 0.0
    %94 = vmatpush.msra.mxu0 0.0
    %95 = vmatpush.msra.mxu0 0.0
    %96 = vmatpush.msra.mxu0 0.0
    %97 = vmatpush.msra.mxu0 0.0
    %98 = vmatpush.msra.mxu0 0.0
    %99 = vmatpush.msra.mxu0 0.0
    %100 = vmatpush.msra.mxu0 0.0
    %101 = vmatpush.msra.mxu0 0.0
    %102 = vmatpush.msra.mxu0 0.0
    %103 = vmatpush.msra.mxu0 0.0
    %104 = vmatpush.msra.mxu0 %v91
    %105 = vmatpush.msra.mxu0 %v90
    %106 = vmatpush.msra.mxu0 %v89
    %107 = vmatpush.msra.mxu0 %v88
    %108 = vmatmul.f32.gmra.mxu0 %v65
    %v109 = vpop.f32.mrf.mxu0
    %v110 = vadd.f32 0.0, %v109
    %111 = vdwg.mxu0
    %s112 = sld [smem:[#allocation3]]
    %v113 = vstv %s112
    %v114 = vmul.f32 %v113, %v50
    %v115 = vmul.f32 %v113, %v54
    %s116 = sld [smem:[#allocation3 + $0x3]]
    %v117 = vstv %s116
    %v118 = vmul.f32 %v117, %v51
    %v119 = vmul.f32 %v117, %v55
    %v120 = vadd.f32 %v114, %v118
    %v121 = vadd.f32 %v115, %v119
    %s122 = sld [smem:[#allocation3 + $0x6]]
    %v123 = vstv %s122
    %v124 = vmul.f32 %v123, %v52
    %v125 = vmul.f32 %v123, %v56
    %v126 = vadd.f32 %v120, %v124
    %v127 = vadd.f32 %v121, %v125
    %s128 = sld [smem:[#allocation3 + $0x9]]
    %v129 = vstv %s128
    %v130 = vmul.f32 %v129, %v53
    %v131 = vmul.f32 %v129, %v57
    %v132 = vadd.f32 %v126, %v130
    %v133 = vadd.f32 %v127, %v131
    %v134 = vld [vmem:[#allocation2] sm:$0xf]
    %vm135 = vcmask 31744
    %v137 = vsel %vm135, %v132, 0
    %vm139 = vcmask 1043456
    %v141 = vsel %vm139, %v110, 0
    %143 = vmatpush.msra.mxu0 0.0
    %144 = vmatpush.msra.mxu0 0.0
    %145 = vmatpush.msra.mxu0 0.0
    %146 = vmatpush.msra.mxu0 0.0
    %147 = vmatpush.msra.mxu0 0.0
    %148 = vmatpush.msra.mxu0 0.0
    %149 = vmatpush.msra.mxu0 0.0
    %150 = vmatpush.msra.mxu0 0.0
    %151 = vmatpush.msra.mxu0 0.0
    %152 = vmatpush.msra.mxu0 0.0
    %153 = vmatpush.msra.mxu0 0.0
    %154 = vmatpush.msra.mxu0 0.0
    %155 = vmatpush.msra.mxu0 0.0
    %156 = vmatpush.msra.mxu0 0.0
    %157 = vmatpush.msra.mxu0 0.0
    %158 = vmatpush.msra.mxu0 %v141
    %159 = vmatmul.f32.gmra.mxu0 %v137
    %v160 = vpop.f32.mrf.mxu0
    %v161 = vadd.f32 0.0, %v160
    %162 = vdwg.mxu0
    %v163 = vadd.f32 %v134, %v161
    %vm164 = vcmask 257024
    %165 = vst.msk [vmem:[#allocation2] sm:$0xf] %vm164, %v163
    %v166 = vld [vmem:[#allocation2 + $0x4] sm:$0xf]
    %v167 = vrot.slane %v110, 4
    %v169 = vsel %vm135, %v133, 0
    %v171 = vsel %vm139, %v167, 0
    %173 = vmatpush.msra.mxu0 0.0
    %174 = vmatpush.msra.mxu0 0.0
    %175 = vmatpush.msra.mxu0 0.0
    %176 = vmatpush.msra.mxu0 0.0
    %177 = vmatpush.msra.mxu0 0.0
    %178 = vmatpush.msra.mxu0 0.0
    %179 = vmatpush.msra.mxu0 0.0
    %180 = vmatpush.msra.mxu0 0.0
    %181 = vmatpush.msra.mxu0 0.0
    %182 = vmatpush.msra.mxu0 0.0
    %183 = vmatpush.msra.mxu0 0.0
    %184 = vmatpush.msra.mxu0 0.0
    %185 = vmatpush.msra.mxu0 0.0
    %186 = vmatpush.msra.mxu0 0.0
    %187 = vmatpush.msra.mxu0 0.0
    %188 = vmatpush.msra.mxu0 %v171
    %189 = vmatmul.f32.gmra.mxu0 %v169
    %v190 = vpop.f32.mrf.mxu0
    %v191 = vadd.f32 0.0, %v190
    %192 = vdwg.mxu0
    %v193 = vadd.f32 %v166, %v191
    %194 = vst.msk [vmem:[#allocation2 + $0x4] sm:$0xf] %vm164, %v193
    %s195 = scalar_lea.vmem [#allocation7], 32
    %v196 = vld [vmem:[%s195] sm:$0xff]
    %v197 = vld [vmem:[%s195 + $0x8] sm:$0xff]
    %v198 = vld [vmem:[%s195 + $0x10] sm:$0xff]
    %v199 = vld [vmem:[%s195 + $0x18] sm:$0xff]
    %200 = vmatpush.msra.mxu0 0.0
    %201 = vmatpush.msra.mxu0 0.0
    %202 = vmatpush.msra.mxu0 0.0
    %203 = vmatpush.msra.mxu0 0.0
    %204 = vmatpush.msra.mxu0 0.0
    %205 = vmatpush.msra.mxu0 0.0
    %206 = vmatpush.msra.mxu0 0.0
    %207 = vmatpush.msra.mxu0 0.0
    %208 = vmatpush.msra.mxu0 0.0
    %209 = vmatpush.msra.mxu0 0.0
    %210 = vmatpush.msra.mxu0 0.0
    %211 = vmatpush.msra.mxu0 0.0
    %212 = vmatpush.msra.mxu0 %v199
    %213 = vmatpush.msra.mxu0 %v198
    %214 = vmatpush.msra.mxu0 %v197
    %215 = vmatpush.msra.mxu0 %v196
    %216 = vmatmul.f32.gmra.mxu0 %v65
    %v217 = vpop.f32.mrf.mxu0
    %v218 = vadd.f32 0.0, %v217
    %219 = vdwg.mxu0
    %s220 = sld [smem:[#allocation3 + $0x1]]
    %v221 = vstv %s220
    %v222 = vmul.f32 %v221, %v50
    %v223 = vmul.f32 %v221, %v54
    %s224 = sld [smem:[#allocation3 + $0x4]]
    %v225 = vstv %s224
    %v226 = vmul.f32 %v225, %v51
    %v227 = vmul.f32 %v225, %v55
    %v228 = vadd.f32 %v222, %v226
    %v229 = vadd.f32 %v223, %v227
    %s230 = sld [smem:[#allocation3 + $0x7]]
    %v231 = vstv %s230
    %v232 = vmul.f32 %v231, %v52
    %v233 = vmul.f32 %v231, %v56
    %v234 = vadd.f32 %v228, %v232
    %v235 = vadd.f32 %v229, %v233
    %s236 = sld [smem:[#allocation3 + $0xa]]
    %v237 = vstv %s236
    %v238 = vmul.f32 %v237, %v53
    %v239 = vmul.f32 %v237, %v57
    %v240 = vadd.f32 %v234, %v238
    %v241 = vadd.f32 %v235, %v239
    %v242 = vld [vmem:[#allocation2] sm:$0xf]
    %v244 = vsel %vm135, %v240, 0
    %v247 = vsel %vm139, %v218, 0
    %249 = vmatpush.msra.mxu0 0.0
    %250 = vmatpush.msra.mxu0 0.0
    %251 = vmatpush.msra.mxu0 0.0
    %252 = vmatpush.msra.mxu0 0.0
    %253 = vmatpush.msra.mxu0 0.0
    %254 = vmatpush.msra.mxu0 0.0
    %255 = vmatpush.msra.mxu0 0.0
    %256 = vmatpush.msra.mxu0 0.0
    %257 = vmatpush.msra.mxu0 0.0
    %258 = vmatpush.msra.mxu0 0.0
    %259 = vmatpush.msra.mxu0 0.0
    %260 = vmatpush.msra.mxu0 0.0
    %261 = vmatpush.msra.mxu0 0.0
    %262 = vmatpush.msra.mxu0 0.0
    %263 = vmatpush.msra.mxu0 0.0
    %264 = vmatpush.msra.mxu0 %v247
    %265 = vmatmul.f32.gmra.mxu0 %v244
    %v266 = vpop.f32.mrf.mxu0
    %v267 = vadd.f32 0.0, %v266
    %268 = vdwg.mxu0
    %v269 = vadd.f32 %v242, %v267
    %270 = vst.msk [vmem:[#allocation2] sm:$0xf] %vm164, %v269
    %v271 = vld [vmem:[#allocation2 + $0x4] sm:$0xf]
    %v272 = vrot.slane %v218, 4
    %v274 = vsel %vm135, %v241, 0
    %v276 = vsel %vm139, %v272, 0
    %278 = vmatpush.msra.mxu0 0.0
    %279 = vmatpush.msra.mxu0 0.0
    %280 = vmatpush.msra.mxu0 0.0
    %281 = vmatpush.msra.mxu0 0.0
    %282 = vmatpush.msra.mxu0 0.0
    %283 = vmatpush.msra.mxu0 0.0
    %284 = vmatpush.msra.mxu0 0.0
    %285 = vmatpush.msra.mxu0 0.0
    %286 = vmatpush.msra.mxu0 0.0
    %287 = vmatpush.msra.mxu0 0.0
    %288 = vmatpush.msra.mxu0 0.0
    %289 = vmatpush.msra.mxu0 0.0
    %290 = vmatpush.msra.mxu0 0.0
    %291 = vmatpush.msra.mxu0 0.0
    %292 = vmatpush.msra.mxu0 0.0
    %293 = vmatpush.msra.mxu0 %v276
    %294 = vmatmul.f32.gmra.mxu0 %v274
    %v295 = vpop.f32.mrf.mxu0
    %v296 = vadd.f32 0.0, %v295
    %297 = vdwg.mxu0
    %v298 = vadd.f32 %v271, %v296
    %299 = vst.msk [vmem:[#allocation2 + $0x4] sm:$0xf] %vm164, %v298
    %s300 = scalar_lea.vmem [#allocation7], 64
    %v301 = vld [vmem:[%s300] sm:$0xff]
    %v302 = vld [vmem:[%s300 + $0x8] sm:$0xff]
    %v303 = vld [vmem:[%s300 + $0x10] sm:$0xff]
    %v304 = vld [vmem:[%s300 + $0x18] sm:$0xff]
    %305 = vmatpush.msra.mxu0 0.0
    %306 = vmatpush.msra.mxu0 0.0
    %307 = vmatpush.msra.mxu0 0.0
    %308 = vmatpush.msra.mxu0 0.0
    %309 = vmatpush.msra.mxu0 0.0
    %310 = vmatpush.msra.mxu0 0.0
    %311 = vmatpush.msra.mxu0 0.0
    %312 = vmatpush.msra.mxu0 0.0
    %313 = vmatpush.msra.mxu0 0.0
    %314 = vmatpush.msra.mxu0 0.0
    %315 = vmatpush.msra.mxu0 0.0
    %316 = vmatpush.msra.mxu0 0.0
    %317 = vmatpush.msra.mxu0 %v304
    %318 = vmatpush.msra.mxu0 %v303
    %319 = vmatpush.msra.mxu0 %v302
    %320 = vmatpush.msra.mxu0 %v301
    %321 = vmatmul.f32.gmra.mxu0 %v65
    %v322 = vpop.f32.mrf.mxu0
    %v323 = vadd.f32 0.0, %v322
    %324 = vdwg.mxu0
    %s325 = sld [smem:[#allocation3 + $0x2]]
    %v326 = vstv %s325
    %v327 = vmul.f32 %v326, %v50
    %v328 = vmul.f32 %v326, %v54
    %s329 = sld [smem:[#allocation3 + $0x5]]
    %v330 = vstv %s329
    %v331 = vmul.f32 %v330, %v51
    %v332 = vmul.f32 %v330, %v55
    %v333 = vadd.f32 %v327, %v331
    %v334 = vadd.f32 %v328, %v332
    %s335 = sld [smem:[#allocation3 + $0x8]]
    %v336 = vstv %s335
    %v337 = vmul.f32 %v336, %v52
    %v338 = vmul.f32 %v336, %v56
    %v339 = vadd.f32 %v333, %v337
    %v340 = vadd.f32 %v334, %v338
    %s341 = sld [smem:[#allocation3 + $0xb]]
    %v342 = vstv %s341
    %v343 = vmul.f32 %v342, %v53
    %v344 = vmul.f32 %v342, %v57
    %v345 = vadd.f32 %v339, %v343
    %v346 = vadd.f32 %v340, %v344
    %v347 = vld [vmem:[#allocation2] sm:$0xf]
    %v349 = vsel %vm135, %v345, 0
    %v352 = vsel %vm139, %v323, 0
    %354 = vmatpush.msra.mxu0 0.0
    %355 = vmatpush.msra.mxu0 0.0
    %356 = vmatpush.msra.mxu0 0.0
    %357 = vmatpush.msra.mxu0 0.0
    %358 = vmatpush.msra.mxu0 0.0
    %359 = vmatpush.msra.mxu0 0.0
    %360 = vmatpush.msra.mxu0 0.0
    %361 = vmatpush.msra.mxu0 0.0
    %362 = vmatpush.msra.mxu0 0.0
    %363 = vmatpush.msra.mxu0 0.0
    %364 = vmatpush.msra.mxu0 0.0
    %365 = vmatpush.msra.mxu0 0.0
    %366 = vmatpush.msra.mxu0 0.0
    %367 = vmatpush.msra.mxu0 0.0
    %368 = vmatpush.msra.mxu0 0.0
    %369 = vmatpush.msra.mxu0 %v352
    %370 = vmatmul.f32.gmra.mxu0 %v349
    %v371 = vpop.f32.mrf.mxu0
    %v372 = vadd.f32 0.0, %v371
    %373 = vdwg.mxu0
    %v374 = vadd.f32 %v347, %v372
    %375 = vst.msk [vmem:[#allocation2] sm:$0xf] %vm164, %v374
    %v376 = vld [vmem:[#allocation2 + $0x4] sm:$0xf]
    %v377 = vrot.slane %v323, 4
    %v379 = vsel %vm135, %v346, 0
    %v381 = vsel %vm139, %v377, 0
    %383 = vmatpush.msra.mxu0 0.0
    %384 = vmatpush.msra.mxu0 0.0
    %385 = vmatpush.msra.mxu0 0.0
    %386 = vmatpush.msra.mxu0 0.0
    %387 = vmatpush.msra.mxu0 0.0
    %388 = vmatpush.msra.mxu0 0.0
    %389 = vmatpush.msra.mxu0 0.0
    %390 = vmatpush.msra.mxu0 0.0
    %391 = vmatpush.msra.mxu0 0.0
    %392 = vmatpush.msra.mxu0 0.0
    %393 = vmatpush.msra.mxu0 0.0
    %394 = vmatpush.msra.mxu0 0.0
    %395 = vmatpush.msra.mxu0 0.0
    %396 = vmatpush.msra.mxu0 0.0
    %397 = vmatpush.msra.mxu0 0.0
    %398 = vmatpush.msra.mxu0 %v381
    %399 = vmatmul.f32.gmra.mxu0 %v379
    %v400 = vpop.f32.mrf.mxu0
    %v401 = vadd.f32 0.0, %v400
    %402 = vdwg.mxu0
    %v403 = vadd.f32 %v376, %v401
    %404 = vst.msk [vmem:[#allocation2 + $0x4] sm:$0xf] %vm164, %v403
    %v405 = vld [vmem:[#allocation2] sm:$0xff]
    %v406 = vmax.f32 %v405, 0.0
    %s407 = scalar_lea.vmem %s4, 32
    %v408 = vld [vmem:[%s407] sm:$0xff]
    %v409 = vld [vmem:[%s407 + $0x8] sm:$0xff]
    %v410 = vld [vmem:[%s407 + $0x10] sm:$0xff]
    %v411 = vld [vmem:[%s407 + $0x18] sm:$0xff]
    %v413 = vsel %vm63, %v406, 0
    %415 = vmatpush.msra.mxu0 0.0
    %416 = vmatpush.msra.mxu0 0.0
    %417 = vmatpush.msra.mxu0 0.0
    %418 = vmatpush.msra.mxu0 0.0
    %419 = vmatpush.msra.mxu0 0.0
    %420 = vmatpush.msra.mxu0 0.0
    %421 = vmatpush.msra.mxu0 0.0
    %422 = vmatpush.msra.mxu0 0.0
    %423 = vmatpush.msra.mxu0 0.0
    %424 = vmatpush.msra.mxu0 0.0
    %425 = vmatpush.msra.mxu0 0.0
    %426 = vmatpush.msra.mxu0 0.0
    %427 = vmatpush.msra.mxu0 %v411
    %428 = vmatpush.msra.mxu0 %v410
    %429 = vmatpush.msra.mxu0 %v409
    %430 = vmatpush.msra.mxu0 %v408
    %431 = vmatmul.f32.gmra.mxu0 %v413
    %v432 = vpop.f32.mrf.mxu0
    %v433 = vadd.f32 0.0, %v432
    %434 = vdwg.mxu0
    %435 = vst.msk [vmem:[#allocation2] sm:$0xff] %vm63, %v433
    %s436 = scalar_lea.vmem [#allocation7], 96
    %v437 = vld [vmem:[%s436] sm:$0xff]
    %v438 = vld [vmem:[%s436 + $0x8] sm:$0xff]
    %v439 = vld [vmem:[%s436 + $0x10] sm:$0xff]
    %v440 = vld [vmem:[%s436 + $0x18] sm:$0xff]
    %441 = vmatpush.msra.mxu0 0.0
    %442 = vmatpush.msra.mxu0 0.0
    %443 = vmatpush.msra.mxu0 0.0
    %444 = vmatpush.msra.mxu0 0.0
    %445 = vmatpush.msra.mxu0 0.0
    %446 = vmatpush.msra.mxu0 0.0
    %447 = vmatpush.msra.mxu0 0.0
    %448 = vmatpush.msra.mxu0 0.0
    %449 = vmatpush.msra.mxu0 0.0
    %450 = vmatpush.msra.mxu0 0.0
    %451 = vmatpush.msra.mxu0 0.0
    %452 = vmatpush.msra.mxu0 0.0
    %453 = vmatpush.msra.mxu0 %v440
    %454 = vmatpush.msra.mxu0 %v439
    %455 = vmatpush.msra.mxu0 %v438
    %456 = vmatpush.msra.mxu0 %v437
    %457 = vmatmul.f32.gmra.mxu0 %v413
    %v458 = vpop.f32.mrf.mxu0
    %v459 = vadd.f32 0.0, %v458
    %460 = vdwg.mxu0
    %s461 = sld [smem:[#allocation3 + $0xc]]
    %v462 = vstv %s461
    %v463 = vmul.f32 %v462, %v50
    %v464 = vmul.f32 %v462, %v54
    %s465 = sld [smem:[#allocation3 + $0xf]]
    %v466 = vstv %s465
    %v467 = vmul.f32 %v466, %v51
    %v468 = vmul.f32 %v466, %v55
    %v469 = vadd.f32 %v463, %v467
    %v470 = vadd.f32 %v464, %v468
    %s471 = sld [smem:[#allocation3 + $0x12]]
    %v472 = vstv %s471
    %v473 = vmul.f32 %v472, %v52
    %v474 = vmul.f32 %v472, %v56
    %v475 = vadd.f32 %v469, %v473
    %v476 = vadd.f32 %v470, %v474
    %s477 = sld [smem:[#allocation3 + $0x15]]
    %v478 = vstv %s477
    %v479 = vmul.f32 %v478, %v53
    %v480 = vmul.f32 %v478, %v57
    %v481 = vadd.f32 %v475, %v479
    %v482 = vadd.f32 %v476, %v480
    %v483 = vld [vmem:[#allocation2] sm:$0xf]
    %v485 = vsel %vm135, %v481, 0
    %v488 = vsel %vm139, %v459, 0
    %490 = vmatpush.msra.mxu0 0.0
    %491 = vmatpush.msra.mxu0 0.0
    %492 = vmatpush.msra.mxu0 0.0
    %493 = vmatpush.msra.mxu0 0.0
    %494 = vmatpush.msra.mxu0 0.0
    %495 = vmatpush.msra.mxu0 0.0
    %496 = vmatpush.msra.mxu0 0.0
    %497 = vmatpush.msra.mxu0 0.0
    %498 = vmatpush.msra.mxu0 0.0
    %499 = vmatpush.msra.mxu0 0.0
    %500 = vmatpush.msra.mxu0 0.0
    %501 = vmatpush.msra.mxu0 0.0
    %502 = vmatpush.msra.mxu0 0.0
    %503 = vmatpush.msra.mxu0 0.0
    %504 = vmatpush.msra.mxu0 0.0
    %505 = vmatpush.msra.mxu0 %v488
    %506 = vmatmul.f32.gmra.mxu0 %v485
    %v507 = vpop.f32.mrf.mxu0
    %v508 = vadd.f32 0.0, %v507
    %509 = vdwg.mxu0
    %v510 = vadd.f32 %v483, %v508
    %511 = vst.msk [vmem:[#allocation2] sm:$0xf] %vm164, %v510
    %v512 = vld [vmem:[#allocation2 + $0x4] sm:$0xf]
    %v513 = vrot.slane %v459, 4
    %v515 = vsel %vm135, %v482, 0
    %v517 = vsel %vm139, %v513, 0
    %519 = vmatpush.msra.mxu0 0.0
    %520 = vmatpush.msra.mxu0 0.0
    %521 = vmatpush.msra.mxu0 0.0
    %522 = vmatpush.msra.mxu0 0.0
    %523 = vmatpush.msra.mxu0 0.0
    %524 = vmatpush.msra.mxu0 0.0
    %525 = vmatpush.msra.mxu0 0.0
    %526 = vmatpush.msra.mxu0 0.0
    %527 = vmatpush.msra.mxu0 0.0
    %528 = vmatpush.msra.mxu0 0.0
    %529 = vmatpush.msra.mxu0 0.0
    %530 = vmatpush.msra.mxu0 0.0
    %531 = vmatpush.msra.mxu0 0.0
    %532 = vmatpush.msra.mxu0 0.0
    %533 = vmatpush.msra.mxu0 0.0
    %534 = vmatpush.msra.mxu0 %v517
    %535 = vmatmul.f32.gmra.mxu0 %v515
    %v536 = vpop.f32.mrf.mxu0
    %v537 = vadd.f32 0.0, %v536
    %538 = vdwg.mxu0
    %v539 = vadd.f32 %v512, %v537
    %540 = vst.msk [vmem:[#allocation2 + $0x4] sm:$0xf] %vm164, %v539
    %s541 = scalar_lea.vmem [#allocation7], 128
    %v542 = vld [vmem:[%s541] sm:$0xff]
    %v543 = vld [vmem:[%s541 + $0x8] sm:$0xff]
    %v544 = vld [vmem:[%s541 + $0x10] sm:$0xff]
    %v545 = vld [vmem:[%s541 + $0x18] sm:$0xff]
    %546 = vmatpush.msra.mxu0 0.0
    %547 = vmatpush.msra.mxu0 0.0
    %548 = vmatpush.msra.mxu0 0.0
    %549 = vmatpush.msra.mxu0 0.0
    %550 = vmatpush.msra.mxu0 0.0
    %551 = vmatpush.msra.mxu0 0.0
    %552 = vmatpush.msra.mxu0 0.0
    %553 = vmatpush.msra.mxu0 0.0
    %554 = vmatpush.msra.mxu0 0.0
    %555 = vmatpush.msra.mxu0 0.0
    %556 = vmatpush.msra.mxu0 0.0
    %557 = vmatpush.msra.mxu0 0.0
    %558 = vmatpush.msra.mxu0 %v545
    %559 = vmatpush.msra.mxu0 %v544
    %560 = vmatpush.msra.mxu0 %v543
    %561 = vmatpush.msra.mxu0 %v542
    %562 = vmatmul.f32.gmra.mxu0 %v413
    %v563 = vpop.f32.mrf.mxu0
    %v564 = vadd.f32 0.0, %v563
    %565 = vdwg.mxu0
    %s566 = sld [smem:[#allocation3 + $0xd]]
    %v567 = vstv %s566
    %v568 = vmul.f32 %v567, %v50
    %v569 = vmul.f32 %v567, %v54
    %s570 = sld [smem:[#allocation3 + $0x10]]
    %v571 = vstv %s570
    %v572 = vmul.f32 %v571, %v51
    %v573 = vmul.f32 %v571, %v55
    %v574 = vadd.f32 %v568, %v572
    %v575 = vadd.f32 %v569, %v573
    %s576 = sld [smem:[#allocation3 + $0x13]]
    %v577 = vstv %s576
    %v578 = vmul.f32 %v577, %v52
    %v579 = vmul.f32 %v577, %v56
    %v580 = vadd.f32 %v574, %v578
    %v581 = vadd.f32 %v575, %v579
    %s582 = sld [smem:[#allocation3 + $0x16]]
    %v583 = vstv %s582
    %v584 = vmul.f32 %v583, %v53
    %v585 = vmul.f32 %v583, %v57
    %v586 = vadd.f32 %v580, %v584
    %v587 = vadd.f32 %v581, %v585
    %v588 = vld [vmem:[#allocation2] sm:$0xf]
    %v590 = vsel %vm135, %v586, 0
    %v593 = vsel %vm139, %v564, 0
    %595 = vmatpush.msra.mxu0 0.0
    %596 = vmatpush.msra.mxu0 0.0
    %597 = vmatpush.msra.mxu0 0.0
    %598 = vmatpush.msra.mxu0 0.0
    %599 = vmatpush.msra.mxu0 0.0
    %600 = vmatpush.msra.mxu0 0.0
    %601 = vmatpush.msra.mxu0 0.0
    %602 = vmatpush.msra.mxu0 0.0
    %603 = vmatpush.msra.mxu0 0.0
    %604 = vmatpush.msra.mxu0 0.0
    %605 = vmatpush.msra.mxu0 0.0
    %606 = vmatpush.msra.mxu0 0.0
    %607 = vmatpush.msra.mxu0 0.0
    %608 = vmatpush.msra.mxu0 0.0
    %609 = vmatpush.msra.mxu0 0.0
    %610 = vmatpush.msra.mxu0 %v593
    %611 = vmatmul.f32.gmra.mxu0 %v590
    %v612 = vpop.f32.mrf.mxu0
    %v613 = vadd.f32 0.0, %v612
    %614 = vdwg.mxu0
    %v615 = vadd.f32 %v588, %v613
    %616 = vst.msk [vmem:[#allocation2] sm:$0xf] %vm164, %v615
    %v617 = vld [vmem:[#allocation2 + $0x4] sm:$0xf]
    %v618 = vrot.slane %v564, 4
    %v620 = vsel %vm135, %v587, 0
    %v622 = vsel %vm139, %v618, 0
    %624 = vmatpush.msra.mxu0 0.0
    %625 = vmatpush.msra.mxu0 0.0
    %626 = vmatpush.msra.mxu0 0.0
    %627 = vmatpush.msra.mxu0 0.0
    %628 = vmatpush.msra.mxu0 0.0
    %629 = vmatpush.msra.mxu0 0.0
    %630 = vmatpush.msra.mxu0 0.0
    %631 = vmatpush.msra.mxu0 0.0
    %632 = vmatpush.msra.mxu0 0.0
    %633 = vmatpush.msra.mxu0 0.0
    %634 = vmatpush.msra.mxu0 0.0
    %635 = vmatpush.msra.mxu0 0.0
    %636 = vmatpush.msra.mxu0 0.0
    %637 = vmatpush.msra.mxu0 0.0
    %638 = vmatpush.msra.mxu0 0.0
    %639 = vmatpush.msra.mxu0 %v622
    %640 = vmatmul.f32.gmra.mxu0 %v620
    %v641 = vpop.f32.mrf.mxu0
    %v642 = vadd.f32 0.0, %v641
    %643 = vdwg.mxu0
    %v644 = vadd.f32 %v617, %v642
    %645 = vst.msk [vmem:[#allocation2 + $0x4] sm:$0xf] %vm164, %v644
    %s646 = scalar_lea.vmem [#allocation7], 160
    %v647 = vld [vmem:[%s646] sm:$0xff]
    %v648 = vld [vmem:[%s646 + $0x8] sm:$0xff]
    %v649 = vld [vmem:[%s646 + $0x10] sm:$0xff]
    %v650 = vld [vmem:[%s646 + $0x18] sm:$0xff]
    %651 = vmatpush.msra.mxu0 0.0
    %652 = vmatpush.msra.mxu0 0.0
    %653 = vmatpush.msra.mxu0 0.0
    %654 = vmatpush.msra.mxu0 0.0
    %655 = vmatpush.msra.mxu0 0.0
    %656 = vmatpush.msra.mxu0 0.0
    %657 = vmatpush.msra.mxu0 0.0
    %658 = vmatpush.msra.mxu0 0.0
    %659 = vmatpush.msra.mxu0 0.0
    %660 = vmatpush.msra.mxu0 0.0
    %661 = vmatpush.msra.mxu0 0.0
    %662 = vmatpush.msra.mxu0 0.0
    %663 = vmatpush.msra.mxu0 %v650
    %664 = vmatpush.msra.mxu0 %v649
    %665 = vmatpush.msra.mxu0 %v648
    %666 = vmatpush.msra.mxu0 %v647
    %667 = vmatmul.f32.gmra.mxu0 %v413
    %v668 = vpop.f32.mrf.mxu0
    %v669 = vadd.f32 0.0, %v668
    %670 = vdwg.mxu0
    %s671 = sld [smem:[#allocation3 + $0xe]]
    %v672 = vstv %s671
    %v673 = vmul.f32 %v672, %v50
    %v674 = vmul.f32 %v672, %v54
    %s675 = sld [smem:[#allocation3 + $0x11]]
    %v676 = vstv %s675
    %v677 = vmul.f32 %v676, %v51
    %v678 = vmul.f32 %v676, %v55
    %v679 = vadd.f32 %v673, %v677
    %v680 = vadd.f32 %v674, %v678
    %s681 = sld [smem:[#allocation3 + $0x14]]
    %v682 = vstv %s681
    %v683 = vmul.f32 %v682, %v52
    %v684 = vmul.f32 %v682, %v56
    %v685 = vadd.f32 %v679, %v683
    %v686 = vadd.f32 %v680, %v684
    %s687 = sld [smem:[#allocation3 + $0x17]]
    %v688 = vstv %s687
    %v689 = vmul.f32 %v688, %v53
    %v690 = vmul.f32 %v688, %v57
    %v691 = vadd.f32 %v685, %v689
    %v692 = vadd.f32 %v686, %v690
    %v693 = vld [vmem:[#allocation2] sm:$0xf]
    %v695 = vsel %vm135, %v691, 0
    %v698 = vsel %vm139, %v669, 0
    %700 = vmatpush.msra.mxu0 0.0
    %701 = vmatpush.msra.mxu0 0.0
    %702 = vmatpush.msra.mxu0 0.0
    %703 = vmatpush.msra.mxu0 0.0
    %704 = vmatpush.msra.mxu0 0.0
    %705 = vmatpush.msra.mxu0 0.0
    %706 = vmatpush.msra.mxu0 0.0
    %707 = vmatpush.msra.mxu0 0.0
    %708 = vmatpush.msra.mxu0 0.0
    %709 = vmatpush.msra.mxu0 0.0
    %710 = vmatpush.msra.mxu0 0.0
    %711 = vmatpush.msra.mxu0 0.0
    %712 = vmatpush.msra.mxu0 0.0
    %713 = vmatpush.msra.mxu0 0.0
    %714 = vmatpush.msra.mxu0 0.0
    %715 = vmatpush.msra.mxu0 %v698
    %716 = vmatmul.f32.gmra.mxu0 %v695
    %v717 = vpop.f32.mrf.mxu0
    %v718 = vadd.f32 0.0, %v717
    %719 = vdwg.mxu0
    %v720 = vadd.f32 %v693, %v718
    %721 = vst.msk [vmem:[#allocation2] sm:$0xf] %vm164, %v720
    %v722 = vld [vmem:[#allocation2 + $0x4] sm:$0xf]
    %v723 = vrot.slane %v669, 4
    %v725 = vsel %vm135, %v692, 0
    %v727 = vsel %vm139, %v723, 0
    %729 = vmatpush.msra.mxu0 0.0
    %730 = vmatpush.msra.mxu0 0.0
    %731 = vmatpush.msra.mxu0 0.0
    %732 = vmatpush.msra.mxu0 0.0
    %733 = vmatpush.msra.mxu0 0.0
    %734 = vmatpush.msra.mxu0 0.0
    %735 = vmatpush.msra.mxu0 0.0
    %736 = vmatpush.msra.mxu0 0.0
    %737 = vmatpush.msra.mxu0 0.0
    %738 = vmatpush.msra.mxu0 0.0
    %739 = vmatpush.msra.mxu0 0.0
    %740 = vmatpush.msra.mxu0 0.0
    %741 = vmatpush.msra.mxu0 0.0
    %742 = vmatpush.msra.mxu0 0.0
    %743 = vmatpush.msra.mxu0 0.0
    %744 = vmatpush.msra.mxu0 %v727
    %745 = vmatmul.f32.gmra.mxu0 %v725
    %v746 = vpop.f32.mrf.mxu0
    %v747 = vadd.f32 0.0, %v746
    %748 = vdwg.mxu0
    %v749 = vadd.f32 %v722, %v747
    %750 = vst.msk [vmem:[#allocation2 + $0x4] sm:$0xf] %vm164, %v749
    %v751 = vld [vmem:[#allocation2] sm:$0xff]
    %v752 = vxor.u32 %v751, 2147483648
    %v753 = vmul.f32 %v752, 1.442695
    %v754 = vpow.pop %v753
    %v755 = vadd.f32 %v754, 1.0
    %v756 = vrcp.pop %v755
    %v757 = vmul.f32 %v755, %v756
    %v758 = vsub.f32 1.0, %v757
    %v759 = vmul.f32 %v756, %v758
    %v760 = vadd.f32 %v756, %v759
    %vm761 = vweird.f32 %v755
    %vm762 = vweird.f32 %v756
    %vm763 = vmor %vm761, %vm762
    %v764 = vsel %vm763, %v756, %v760
    %v765 = vand.u32 2147483647, %v755
    %vm766 = vcmp.eq.f32.partialorder %v765, 8.507059e+37
    %v767 = vand.u32 %v755, 2147483648
    %v768 = vor.u32 1.1754944e-38, %v767
    %v769 = vsel %vm766, %v768, %v764
    %v770 = vmul.f32 1.0, %v769
    %771 = vst.msk [vmem:[#allocation8] sm:$0xff] %vm63, %v770
    // Predicated region
    $region30: #{tpu_custom_call.1} parent=1 // pred_check
      _
    $region31: #{tpu_custom_call.1} parent=1 // pred_check_branch
      %773 = sbr.rel (0) target = $region33
    $region32: #{tpu_custom_call.1} parent=1 // pred_region
      %775 = vsyncadd [#allocation5], 0
      %s777 = sshll.u32 [#allocation8], 4
      %s778 = int_to_ptr.vmem [resolvable:$true] %s777
      %s779 = sshll.u32 %s5, 4
      %s780 = int_to_ptr.hbm [resolvable:$true] %s779
      %782 = dma.vmem_to_hbm [thread:$0]  %s778, 128, %s780, [#allocation5]
    $region33: #{tpu_custom_call.1} parent=1 // pred_fallthru
      _
    // Predicated region
    $region34: #{tpu_custom_call.1} parent=1 // pred_check
      _
    $region35: #{tpu_custom_call.1} parent=1 // pred_check_branch
      %784 = sbr.rel (0) target = $region37
    $region36: #{tpu_custom_call.1} parent=1 // pred_region
      %786 = dma.done [#allocation5], 128
    $region37: #{tpu_custom_call.1} parent=1 // pred_fallthru
      _
    %787 = vsyncpa [#allocation4], 1
    %788 = vsyncpa [#allocation5], 1
    %789 = vsyncpa [#allocation6], 1

</llo_original>
